<compile_context>
chip_gen: v5e
topology: v5e:2x2
jax: 0.10.0
libtpu: 0.0.40
codegen_flags: <defaults>
</compile_context>

<pallas_src>
import functools

import jax
import jax.numpy as jnp
import numpy as np
from jax import lax
from jax.experimental import pallas as pl
from jax.experimental.pallas import tpu as pltpu

IGNORE_INDEX = -1  # the module hard-codes ignore_index=-1 (outside [0, nclass))


def _cdiv(a, b):
    return -(-a // b)


def _round_up(a, b):
    return _cdiv(a, b) * b


# --------------------------------------------------------------------------
# Fused streaming kernel: per-(batch, half) per-class pixel counts + NLL sums.
# --------------------------------------------------------------------------
def _fused_kernel(t_ref, x_ref, cnt_out_ref, nll_out_ref, cnt_vec, nll_vec, *,
                  nclass, hw, tile, chunk, blocks_per_group):
    pi = pl.program_id(1)   # spatial half (megacore split; usually extent 1)
    si = pl.program_id(2)   # spatial block within the half (reduction axis)

    @pl.when(si == 0)
    def _():
        cnt_vec[...] = jnp.zeros_like(cnt_vec)
        nll_vec[...] = jnp.zeros_like(nll_vec)

    c = x_ref.shape[1]
    n_chunks = tile // chunk

    # Hoisted per-step constants (JAX does not CSE broadcasts inside loops).
    cls = lax.broadcasted_iota(jnp.int32, (c, 1), 0)        # class ids (sublanes)
    lane = lax.broadcasted_iota(jnp.int32, (1, chunk), 1)   # lane offsets
    # LOGICAL (unclamped) element offset of this block. Phantom blocks created
    # by an odd megacore split re-read the last real block (clamped index_map)
    # but have col >= hw everywhere, so they contribute exactly zero.
    col0 = (pi * blocks_per_group + si) * tile

    def chunk_body(j, carry):
        cnt_p, nll_p = carry
        start = j * chunk if isinstance(j, int) else pl.multiple_of(j * chunk, chunk)
        x = x_ref[0, :, pl.ds(start, chunk)].astype(jnp.float32)   # (C, chunk)
        t = t_ref[0, :, pl.ds(start, chunk)].astype(jnp.int32)     # (1, chunk)

        col = (col0 + j * chunk) + lane                            # (1, chunk)
        # Fold ALL validity into the target once -> one-hot is a single
        # equality. Matches torch.histc(min=0, max=nclass-1) and
        # F.cross_entropy(ignore_index=-1).
        valid = jnp.logical_and(col < hw,
                                jnp.logical_and(t >= 0, t < nclass))
        t_m = jnp.where(valid, t, -1)                              # (1, chunk)
        onehot = t_m == cls                                        # (C, chunk)

        # log-softmax over the class (sublane) axis; nll at the target class is
        # (lse - x) selected by the one-hot -> no per-chunk class gather.
        m = jnp.max(x, axis=0, keepdims=True)                      # (1, chunk)
        lse = jnp.log(jnp.sum(jnp.exp(x - m), axis=0, keepdims=True)) + m
        # TODO(synk): on v7x-only builds, exp((x-m).astype(bf16)) ~halves EUP
        # load (~1e-3 rel. error in lse) -- kept f32 here for exact parity.

        # where-SELECT (never multiply): OOB/NaN garbage cannot propagate.
        cnt_p = cnt_p + onehot.astype(jnp.float32)
        nll_p = nll_p + jnp.where(onehot, lse - x, 0.0)
        return cnt_p, nll_p

    init = (cnt_vec[...], nll_vec[...])
    if n_chunks == 1:
        cnt_f, nll_f = chunk_body(0, init)
    else:
        cnt_f, nll_f = lax.fori_loop(0, n_chunks, chunk_body, init,
                                     unroll=2 if n_chunks % 2 == 0 else 1)
    cnt_vec[...] = cnt_f
    nll_vec[...] = nll_f

    @pl.when(si == pl.num_programs(2) - 1)
    def _():
        # Single cross-lane reduction per (batch element, half).
        cnt_out_ref[0, 0] = jnp.sum(cnt_vec[...], axis=1, keepdims=True)  # (C, 1)
        nll_out_ref[0, 0] = jnp.sum(nll_vec[...], axis=1, keepdims=True)  # (C, 1)


# --------------------------------------------------------------------------
# Tiling heuristics
# --------------------------------------------------------------------------
def _pick_chunk(c):
    # Lane width of one in-kernel processing chunk: keep the (C, chunk) f32
    # working set (x, onehot, nll partial, two accumulators) vreg-resident-ish.
    chunk = (16 * 1024) // (max(1, c) * 4)
    return max(128, min(1024, (chunk // 128) * 128))


def _pick_tile(hw, c, itemsize, chunk, block_bytes):
    # ~1 MiB of logits per pipelined block (>=85% of HBM roofline per the
    # measured tile sweep), tail-balanced, and a multiple of `chunk` so the
    # in-kernel chunk loop is exact.  No element-count cap.
    tile_max = max(chunk,
                   (max(1, block_bytes) // max(1, c * itemsize) // chunk) * chunk)
    n_blocks = max(1, _cdiv(hw, tile_max))
    tile = _round_up(_cdiv(hw, n_blocks), chunk)
    if tile > hw:
        # Tiny spatial extent: one full-extent block (always layout-legal),
        # processed as a single static chunk.
        return hw, hw, 1
    return tile, chunk, _cdiv(hw, tile)


# --------------------------------------------------------------------------
# Wrapper
# --------------------------------------------------------------------------
def class_balanced_loss(logits_nchw, target_nhw, nclass, beta=1.0 - 0.001, *,
                        block_bytes=1 << 20, chunk=None):
    n, c, h, w = logits_nchw.shape
    assert c == nclass
    hw = h * w

    # Free reshapes only (trailing-dim collapse): no transpose, no pad, no cast
    # of the logits. Targets stream in their NATIVE narrow dtype and are
    # widened inside the kernel.
    x = logits_nchw.reshape(n, c, hw)
    t = target_nhw.reshape(n, 1, hw)
    if not jnp.issubdtype(t.dtype, jnp.integer):
        t = t.astype(jnp.int32)

    if chunk is None:
        chunk = _pick_chunk(c)
    tile, chunk, s_blocks = _pick_tile(hw, c, x.dtype.itemsize, chunk, block_bytes)

    # Megacore: guarantee a parallel axis of extent >= 2 even when N == 1 by
    # splitting the spatial blocks into two independently reduced halves
    # (no-op on single-TC v5e/v6e).
    halves = 2 if (n == 1 and s_blocks >= 2) else 1
    blocks_per_group = _cdiv(s_blocks, halves)

    def spatial_idx(pi, si):
        # Clamp: the phantom block of an odd split re-reads the last real
        # block but is fully masked in-kernel (logical col >= hw).
        return jnp.minimum(pi * blocks_per_group + si, s_blocks - 1)

    x_index = lambda ni, pi, si: (ni, 0, spatial_idx(pi, si))
    t_index = lambda ni, pi, si: (ni, 0, spatial_idx(pi, si))
    o_index = lambda ni, pi, si: (ni, pi, 0, 0)

    # Triple-buffer the (large, C-strided) logits stream when there is enough
    # pipeline depth; guarded so a Pallas without pipeline_mode still runs.
    x_spec = pl.BlockSpec((1, c, tile), x_index)
    if s_blocks >= 3:
        try:
            x_spec = pl.BlockSpec((1, c, tile), x_index,
                                  pipeline_mode=pl.Buffered(3))
        except TypeError:
            pass

    cost = pl.CostEstimate(
        flops=int(8 * n * c * hw),
        transcendentals=int(n * hw * (c + 1)),
        bytes_accessed=int(x.size * x.dtype.itemsize
                           + t.size * t.dtype.itemsize
                           + 2 * n * halves * c * 4))

    cnt, nll_sum = pl.pallas_call(
        functools.partial(_fused_kernel, nclass=nclass, hw=hw, tile=tile,
                          chunk=chunk, blocks_per_group=blocks_per_group),
        out_shape=(jax.ShapeDtypeStruct((n, halves, c, 1), jnp.float32),
                   jax.ShapeDtypeStruct((n, halves, c, 1), jnp.float32)),
        grid=(n, halves, blocks_per_group),
        in_specs=[pl.BlockSpec((1, 1, tile), t_index), x_spec],
        out_specs=(pl.BlockSpec((1, 1, c, 1), o_index),
                   pl.BlockSpec((1, 1, c, 1), o_index)),
        scratch_shapes=[pltpu.VMEM((c, chunk), jnp.float32),   # count partials
                        pltpu.VMEM((c, chunk), jnp.float32)],  # nll-sum partials
        compiler_params=pltpu.CompilerParams(
            dimension_semantics=("parallel", "parallel", "arbitrary")),
        cost_estimate=cost,
    )(t, x)

    # Trivial O(N*C) epilogue: combine partials, class-balanced weights,
    # weighted 'mean' == F.cross_entropy(weight=w, ignore_index=-1).
    counts = jnp.sum(cnt[:, :, :, 0], axis=(0, 1))        # (C,)
    nlls = jnp.sum(nll_sum[:, :, :, 0], axis=(0, 1))      # (C,)
    # counts == 0 -> inf -> replaced by 0 (torch: tvect_sum[inf] = 0).
    # NOTE: beta == 1.0 exactly gives 0/0 == NaN (same as torch); loss is NaN
    # when every pixel is ignored (denominator 0), same as torch.
    weights = jnp.where(counts > 0.0,
                        (1.0 - beta) / (1.0 - jnp.power(beta, counts)),
                        0.0)
    return jnp.sum(weights * nlls) / jnp.sum(weights * counts)


# --------------------------------------------------------------------------
# Pure-JAX reference (mirrors the PyTorch module semantics)
# --------------------------------------------------------------------------
def _ref_loss(logits_nchw, target_nhw, nclass, beta=1.0 - 0.001):
    n, c, h, w = logits_nchw.shape
    x = jnp.transpose(logits_nchw, (0, 2, 3, 1)).reshape(-1, c).astype(jnp.float32)
    t = target_nhw.reshape(-1).astype(jnp.int32)

    onehot = jax.nn.one_hot(t, nclass, dtype=jnp.float32)   # -1 -> all zeros
    counts = jnp.sum(onehot, axis=0)
    weights = jnp.where(counts > 0, (1.0 - beta) / (1.0 - beta ** counts), 0.0)

    logp = jax.nn.log_softmax(x, axis=-1)
    valid = jnp.logical_and(t >= 0, t < nclass)
    t_safe = jnp.where(valid, t, 0)
    nll = -jnp.take_along_axis(logp, t_safe[:, None], axis=-1)[:, 0]
    w_t = jnp.where(valid, weights[t_safe], 0.0)
    return jnp.sum(w_t * nll) / jnp.sum(w_t)


def _check(name, got, want):
    if not np.isfinite(float(got)) or not np.allclose(float(got), float(want),
                                                      rtol=2e-4, atol=1e-5):
        raise AssertionError(f"{name}: pallas={float(got)} ref={float(want)}")


if __name__ == "__main__":
    key = jax.random.PRNGKey(0)
    k1, k2, k3, k4, k5, k6 = jax.random.split(key, 6)

    # 1) Default config: N=2, C=4, 16x16, f32 logits / int32 targets
    #    (single full-extent spatial block path).
    N, C, H, W = 2, 4, 16, 16
    logits1 = jax.random.normal(k1, (N, C, H, W), dtype=jnp.float32)
    target1 = jax.random.randint(k2, (N, H, W), -1, C, dtype=jnp.int32)
    fn1 = jax.jit(functools.partial(class_balanced_loss, nclass=C))
    loss1 = jax.block_until_ready(fn1(logits1, target1))
    _check("f32_single_block", loss1, _ref_loss(logits1, target1, C))

    # 2) Streaming path with N=1: exercises the megacore spatial split, an odd
    #    block count (clamped phantom block), C not a multiple of 8, a partial
    #    tail block, and the 2-chunk fori_loop body.
    N, C, H, W = 1, 5, 24, 24
    logits2 = jax.random.normal(k3, (N, C, H, W), dtype=jnp.float32)
    target2 = jax.random.randint(k4, (N, H, W), -1, C, dtype=jnp.int32)
    fn2 = jax.jit(functools.partial(class_balanced_loss, nclass=C,
                                    block_bytes=6000, chunk=128))
    loss2 = jax.block_until_ready(fn2(logits2, target2))
    _check("f32_n1_megacore_split", loss2, _ref_loss(logits2, target2, C))

    # 3) Narrow dtypes: bf16 logits + int8 targets, multi-block, multi-chunk.
    N, C, H, W = 2, 4, 32, 32
    logits3 = jax.random.normal(k5, (N, C, H, W), dtype=jnp.bfloat16)
    target3 = jax.random.randint(k6, (N, H, W), -1, C, dtype=jnp.int32).astype(jnp.int8)
    fn3 = jax.jit(functools.partial(class_balanced_loss, nclass=C,
                                    block_bytes=4096, chunk=256))
    loss3 = jax.block_until_ready(fn3(logits3, target3))
    _check("bf16_int8_streaming", loss3, _ref_loss(logits3, target3, C))

    print("KERNEL_OK")
</pallas_src>

<mosaic_0001>
module attributes {stable_mosaic.version = 11 : i64} {
  func.func @_fused_kernel(%arg0: i32, %arg1: i32, %arg2: i32, %arg3: memref<1x1x256xi32, #tpu.memory_space<vmem>>, %arg4: memref<1x4x256xf32, #tpu.memory_space<vmem>>, %arg5: memref<1x1x4x1xf32, #tpu.memory_space<vmem>>, %arg6: memref<1x1x4x1xf32, #tpu.memory_space<vmem>>, %arg7: memref<4x256xf32, #tpu.memory_space<vmem>>, %arg8: memref<4x256xf32, #tpu.memory_space<vmem>>) attributes {dimension_semantics = [#tpu.dimension_semantics<parallel>, #tpu.dimension_semantics<parallel>, #tpu.dimension_semantics<arbitrary>], iteration_bounds = array<i64: 2, 1, 1>, scalar_prefetch = 0 : i64, scratch_operands = 2 : i64, tpu.core_type = #tpu.core_type<tc>, window_params = [{transform_indices = @transform_0, window_bounds = array<i64: 1, 1, 256>}, {transform_indices = @transform_1, window_bounds = array<i64: 1, 4, 256>}, {transform_indices = @transform_2, window_bounds = array<i64: 1, 1, 4, 1>}, {transform_indices = @transform_3, window_bounds = array<i64: 1, 1, 4, 1>}]} {
    %c0_i32 = arith.constant 0 : i32
    %0 = arith.cmpi eq, %arg2, %c0_i32 : i32
    %1 = arith.extui %0 : i1 to i32
    %c0_i32_0 = arith.constant 0 : i32
    %2 = arith.cmpi ne, %1, %c0_i32_0 : i32
    scf.if %2 {
      %cst_21 = arith.constant 0.000000e+00 : f32
      %52 = vector.broadcast %cst_21 : f32 to vector<4x256xf32>
      %c0_22 = arith.constant 0 : index
      %c0_23 = arith.constant 0 : index
      %53 = vector.load %arg7[%c0_22, %c0_23] : memref<4x256xf32, #tpu.memory_space<vmem>>, vector<4x256xf32>
      tpu.vector_store %arg7[%c0_22, %c0_23], %52 {strides = array<i32>} : memref<4x256xf32, #tpu.memory_space<vmem>>, vector<4x256xf32>,
      %cst_24 = arith.constant 0.000000e+00 : f32
      %54 = vector.broadcast %cst_24 : f32 to vector<4x256xf32>
      %c0_25 = arith.constant 0 : index
      %c0_26 = arith.constant 0 : index
      %55 = vector.load %arg8[%c0_25, %c0_26] : memref<4x256xf32, #tpu.memory_space<vmem>>, vector<4x256xf32>
      tpu.vector_store %arg8[%c0_25, %c0_26], %54 {strides = array<i32>} : memref<4x256xf32, #tpu.memory_space<vmem>>, vector<4x256xf32>,
    } else {
    }
    %3 = tpu.iota {dimensions = array<i32: 0>} : vector<4x1xi32>
    %4 = tpu.iota {dimensions = array<i32: 1>} : vector<1x256xi32>
    %c1_i32 = arith.constant 1 : i32
    %5 = arith.muli %arg1, %c1_i32 : i32
    %6 = arith.addi %5, %arg2 : i32
    %c256_i32 = arith.constant 256 : i32
    %7 = arith.muli %6, %c256_i32 : i32
    %c0 = arith.constant 0 : index
    %c0_1 = arith.constant 0 : index
    %8 = vector.load %arg7[%c0, %c0_1] : memref<4x256xf32, #tpu.memory_space<vmem>>, vector<4x256xf32>
    %c0_2 = arith.constant 0 : index
    %c0_3 = arith.constant 0 : index
    %9 = vector.load %arg8[%c0_2, %c0_3] : memref<4x256xf32, #tpu.memory_space<vmem>>, vector<4x256xf32>
    %c0_4 = arith.constant 0 : index
    %c0_5 = arith.constant 0 : index
    %c0_6 = arith.constant 0 : index
    %10 = vector.load %arg4[%c0_4, %c0_5, %c0_6] : memref<1x4x256xf32, #tpu.memory_space<vmem>>, vector<1x4x256xf32>
    %11 = vector.shape_cast %10 : vector<1x4x256xf32> to vector<4x256xf32>
    %c0_7 = arith.constant 0 : index
    %c0_8 = arith.constant 0 : index
    %c0_9 = arith.constant 0 : index
    %12 = vector.load %arg3[%c0_7, %c0_8, %c0_9] : memref<1x1x256xi32, #tpu.memory_space<vmem>>, vector<1x1x256xi32>
    %13 = vector.shape_cast %12 : vector<1x1x256xi32> to vector<1x256xi32>
    %c0_i32_10 = arith.constant 0 : i32
    %14 = arith.addi %7, %c0_i32_10 : i32
    %15 = vector.broadcast %14 : i32 to vector<1x256xi32>
    %16 = arith.addi %15, %4 : vector<1x256xi32>
    %c256_i32_11 = arith.constant 256 : i32
    %17 = vector.broadcast %c256_i32_11 : i32 to vector<1x256xi32>
    %18 = arith.cmpi slt, %16, %17 : vector<1x256xi32>
    %c0_i32_12 = arith.constant 0 : i32
    %19 = vector.broadcast %c0_i32_12 : i32 to vector<1x256xi32>
    %20 = arith.cmpi sge, %13, %19 : vector<1x256xi32>
    %c4_i32 = arith.constant 4 : i32
    %21 = vector.broadcast %c4_i32 : i32 to vector<1x256xi32>
    %22 = arith.cmpi slt, %13, %21 : vector<1x256xi32>
    %23 = arith.andi %20, %22 : vector<1x256xi1>
    %24 = arith.andi %18, %23 : vector<1x256xi1>
    %c-1_i32 = arith.constant -1 : i32
    %25 = vector.broadcast %c-1_i32 : i32 to vector<1x256xi32>
    %26 = arith.select %24, %13, %25 : vector<1x256xi1>, vector<1x256xi32>
    %27 = vector.broadcast %26 : vector<1x256xi32> to vector<4x256xi32>
    %28 = vector.broadcast %3 : vector<4x1xi32> to vector<4x256xi32>
    %29 = arith.cmpi eq, %27, %28 : vector<4x256xi32>
    %cst = arith.constant dense<0xFF800000> : vector<256xf32>
    %30 = vector.multi_reduction <maximumf>, %11, %cst [0] : vector<4x256xf32> to vector<256xf32>
    %31 = vector.shape_cast %30 : vector<256xf32> to vector<1x256xf32>
    %32 = vector.broadcast %31 : vector<1x256xf32> to vector<4x256xf32>
    %33 = arith.subf %11, %32 : vector<4x256xf32>
    %34 = math.exp %33 : vector<4x256xf32>
    %cst_13 = arith.constant dense<0.000000e+00> : vector<256xf32>
    %35 = vector.multi_reduction <add>, %34, %cst_13 [0] : vector<4x256xf32> to vector<256xf32>
    %36 = vector.shape_cast %35 : vector<256xf32> to vector<1x256xf32>
    %37 = math.log %36 : vector<1x256xf32>
    %38 = arith.addf %37, %31 : vector<1x256xf32>
    %39 = arith.extui %29 : vector<4x256xi1> to vector<4x256xi32>
    %40 = arith.sitofp %39 : vector<4x256xi32> to vector<4x256xf32>
    %41 = arith.addf %8, %40 : vector<4x256xf32>
    %42 = vector.broadcast %38 : vector<1x256xf32> to vector<4x256xf32>
    %43 = arith.subf %42, %11 : vector<4x256xf32>
    %cst_14 = arith.constant 0.000000e+00 : f32
    %44 = vector.broadcast %cst_14 : f32 to vector<4x256xf32>
    %45 = arith.select %29, %43, %44 : vector<4x256xi1>, vector<4x256xf32>
    %46 = arith.addf %9, %45 : vector<4x256xf32>
    %c0_15 = arith.constant 0 : index
    %c0_16 = arith.constant 0 : index
    %47 = vector.load %arg7[%c0_15, %c0_16] : memref<4x256xf32, #tpu.memory_space<vmem>>, vector<4x256xf32>
    tpu.vector_store %arg7[%c0_15, %c0_16], %41 {strides = array<i32>} : memref<4x256xf32, #tpu.memory_space<vmem>>, vector<4x256xf32>,
    %c0_17 = arith.constant 0 : index
    %c0_18 = arith.constant 0 : index
    %48 = vector.load %arg8[%c0_17, %c0_18] : memref<4x256xf32, #tpu.memory_space<vmem>>, vector<4x256xf32>
    tpu.vector_store %arg8[%c0_17, %c0_18], %46 {strides = array<i32>} : memref<4x256xf32, #tpu.memory_space<vmem>>, vector<4x256xf32>,
    %c0_i32_19 = arith.constant 0 : i32
    %49 = arith.cmpi eq, %arg2, %c0_i32_19 : i32
    %50 = arith.extui %49 : i1 to i32
    %c0_i32_20 = arith.constant 0 : i32
    %51 = arith.cmpi ne, %50, %c0_i32_20 : i32
    scf.if %51 {
      %c0_21 = arith.constant 0 : index
      %c0_22 = arith.constant 0 : index
      %52 = vector.load %arg7[%c0_21, %c0_22] : memref<4x256xf32, #tpu.memory_space<vmem>>, vector<4x256xf32>
      %cst_23 = arith.constant dense<0.000000e+00> : vector<4xf32>
      %53 = vector.multi_reduction <add>, %52, %cst_23 [1] : vector<4x256xf32> to vector<4xf32>
      %54 = vector.shape_cast %53 : vector<4xf32> to vector<4x1xf32>
      %c0_24 = arith.constant 0 : index
      %c0_25 = arith.constant 0 : index
      %c0_26 = arith.constant 0 : index
      %c0_27 = arith.constant 0 : index
      %55 = vector.load %arg5[%c0_24, %c0_25, %c0_26, %c0_27] : memref<1x1x4x1xf32, #tpu.memory_space<vmem>>, vector<1x1x4x1xf32>
      %56 = vector.shape_cast %55 : vector<1x1x4x1xf32> to vector<4x1xf32>
      %57 = vector.shape_cast %54 : vector<4x1xf32> to vector<1x1x4x1xf32>
      tpu.vector_store %arg5[%c0_24, %c0_25, %c0_26, %c0_27], %57 {strides = array<i32>} : memref<1x1x4x1xf32, #tpu.memory_space<vmem>>, vector<1x1x4x1xf32>,
      %c0_28 = arith.constant 0 : index
      %c0_29 = arith.constant 0 : index
      %58 = vector.load %arg8[%c0_28, %c0_29] : memref<4x256xf32, #tpu.memory_space<vmem>>, vector<4x256xf32>
      %cst_30 = arith.constant dense<0.000000e+00> : vector<4xf32>
      %59 = vector.multi_reduction <add>, %58, %cst_30 [1] : vector<4x256xf32> to vector<4xf32>
      %60 = vector.shape_cast %59 : vector<4xf32> to vector<4x1xf32>
      %c0_31 = arith.constant 0 : index
      %c0_32 = arith.constant 0 : index
      %c0_33 = arith.constant 0 : index
      %c0_34 = arith.constant 0 : index
      %61 = vector.load %arg6[%c0_31, %c0_32, %c0_33, %c0_34] : memref<1x1x4x1xf32, #tpu.memory_space<vmem>>, vector<1x1x4x1xf32>
      %62 = vector.shape_cast %61 : vector<1x1x4x1xf32> to vector<4x1xf32>
      %63 = vector.shape_cast %60 : vector<4x1xf32> to vector<1x1x4x1xf32>
      tpu.vector_store %arg6[%c0_31, %c0_32, %c0_33, %c0_34], %63 {strides = array<i32>} : memref<1x1x4x1xf32, #tpu.memory_space<vmem>>, vector<1x1x4x1xf32>,
    } else {
    }
    return
  }
  func.func @transform_0(%arg0: i32, %arg1: i32, %arg2: i32) -> (i32, i32, i32) {
    %c1_i32 = arith.constant 1 : i32
    %0 = arith.muli %arg1, %c1_i32 : i32
    %1 = arith.addi %0, %arg2 : i32
    %c0_i32 = arith.constant 0 : i32
    %2 = arith.minsi %1, %c0_i32 : i32
    %c0_i32_0 = arith.constant 0 : i32
    %c0_i32_1 = arith.constant 0 : i32
    return %arg0, %c0_i32_0, %2 : i32, i32, i32
  }
  func.func @transform_1(%arg0: i32, %arg1: i32, %arg2: i32) -> (i32, i32, i32) {
    %c1_i32 = arith.constant 1 : i32
    %0 = arith.muli %arg1, %c1_i32 : i32
    %1 = arith.addi %0, %arg2 : i32
    %c0_i32 = arith.constant 0 : i32
    %2 = arith.minsi %1, %c0_i32 : i32
    %c0_i32_0 = arith.constant 0 : i32
    %c0_i32_1 = arith.constant 0 : i32
    return %arg0, %c0_i32_0, %2 : i32, i32, i32
  }
  func.func @transform_2(%arg0: i32, %arg1: i32, %arg2: i32) -> (i32, i32, i32, i32) {
    %c0_i32 = arith.constant 0 : i32
    %c0_i32_0 = arith.constant 0 : i32
    %c0_i32_1 = arith.constant 0 : i32
    return %arg0, %arg1, %c0_i32, %c0_i32_0 : i32, i32, i32, i32
  }
  func.func @transform_3(%arg0: i32, %arg1: i32, %arg2: i32) -> (i32, i32, i32, i32) {
    %c0_i32 = arith.constant 0 : i32
    %c0_i32_0 = arith.constant 0 : i32
    %c0_i32_1 = arith.constant 0 : i32
    return %arg0, %arg1, %c0_i32, %c0_i32_0 : i32, i32, i32, i32
  }
}

</mosaic_0001>

<llo_original>
// kernel: class_balanced_loss.1
$region0: #{class_balanced_loss.1}
  #allocation0 [shape = 'u32[]', space=smem, size = 0x4, offset = 0x4, fixed_abs, tag = 'smem constant byte address 0x4 - core index']
  #allocation1 [shape = 'u32[72,128]{1,0:T(1,128)}', space=vmem, size = 0x9000, scoped, tag = 'internal scratch']
  #allocation2 [shape = 'f32[4,256]{1,0:T(4,128)}', space=vmem, size = 0x1000, scoped, tag = 'scratch operand']
  #allocation3 [shape = 'f32[4,256]{1,0:T(4,128)}', space=vmem, size = 0x1000, scoped, tag = 'scratch operand']
  %s0 = inlined_call_operand.vmem [shape: s32[2,1,256], index: 0, kind: input, shape index: {}]
  %s1 = inlined_call_operand.vmem [shape: f32[2,4,256], index: 1, kind: input, shape index: {}]
  %s2 = inlined_call_operand.vmem [shape: f32[2,1,4,1], index: 2, kind: output, shape index: {0}]
  %s3 = inlined_call_operand.vmem [shape: f32[2,1,4,1], index: 3, kind: output, shape index: {1}]
  %4 = xla_tuple %s2, %s3
  %s5 = sld [smem:[#allocation0]]
  $region57: #{class_balanced_loss.1} parent=0
    _
  %s7 = ssub.s32 1, %s5
  %s8 = scalar_select 0, %s7, %s5
  loop: start=0, step=1, limit=4
  $region2: #{class_balanced_loss.1} parent=0 // loop_pre_header
    _
  $region3: #{class_balanced_loss.1} parent=0 // loop_header
    %s10 = sphi 0, %s14
    %p11 = scmp.ge.s32.totalorder %s10, 4
    %s17 = sphi 0, %s36
    %s18 = sphi 0, %s32
    %s19 = sphi 0, %s28
    %s20 = sphi 0, %s17
    %s21 = sphi 0, %s18
    %s22 = sphi 0, %s19
    %s23 = sphi 0, %s20
    %s24 = sphi 0, %s21
    %s25 = sphi 0, %s22
    %s47 = sphi 0, %s49
    %s50 = sphi 0, %s47
    %s51 = sphi 0, %s50
    %s67 = sphi 0, %s51
    %s81 = sphi 0, %s83
    %s84 = sphi 0, %s81
    %s85 = sphi 0, %s84
    %s101 = sphi 0, %s85
    %s109 = sphi 0, %s111
    %s112 = sphi 0, %s109
    %s113 = sphi 0, %s112
    %s129 = sphi 0, %s113
    %s137 = sphi 0, %s139
    %s140 = sphi 0, %s137
    %s141 = sphi 0, %s140
    %s157 = sphi 0, %s141
  $region4: #{class_balanced_loss.1} parent=0 // loop_header_branch
    %13 = sbr.rel (%p11) target = $region8
  $region5: #{class_balanced_loss.1} parent=0 // loop_body
    %s15 = ssub.s32 %s10, 1
    %s16 = ssub.s32 %s10, 2
    %s26 = sadd.s32 1, %s19
    %p27 = scmp.ge.s32.totalorder %s26, 1
    %s28 = scalar_select %p27, 0, %s26
    %s29 = sadd.s32 1, %s18
    %s30 = scalar_select %p27, %s29, %s18
    %p31 = scmp.ge.s32.totalorder %s30, 1
    %s32 = scalar_select %p31, 0, %s30
    %s33 = sadd.s32 1, %s17
    %s34 = scalar_select %p31, %s33, %s17
    %p35 = scmp.ge.s32.totalorder %s34, 2
    %s36 = scalar_select %p35, 0, %s34
    %s37 = sadd.s32 %s18, %s19
    %p38 = scmp.lt.s32.totalorder %s37, 0
    %s39 = scalar_select %p38, %s37, 0
    %s40 = sadd.s32 %s32, %s28
    %p41 = scmp.lt.s32.totalorder %s40, 0
    %s42 = scalar_select %p41, %s40, 0
    %s43 = ssub.s32 %s17, %s36
    %s44 = ssub.s32 %s39, %s42
    %s45 = sor.u32 %s43, %s44
    %p46 = scmp.eq.s32.totalorder %s45, 0
    %s48 = sadd.s32 %s47, 1
    %s49 = scalar_select %p46, %s47, %s48
    %p52 = pneg %p46
    %p53 = scmp.eq.s32.totalorder %s10, 1
    %p54 = por %p52, %p53
    %p55 = scmp.ne.s32.totalorder %s47, %s50
    %p56 = scmp.eq.s32.totalorder %s10, 0
    %p57 = por %p55, %p56
    %p58 = scmp.ne.s32.totalorder %s47, %s50
    %p59 = scmp.eq.s32.totalorder %s15, 1
    %p60 = por %p58, %p59
    %p61 = scmp.ne.s32.totalorder %s50, %s51
    %p62 = scmp.eq.s32.totalorder %s15, 0
    %p63 = por %p61, %p62
    %p64 = scmp.ne.s32.totalorder %s50, %s51
    %p65 = scmp.eq.s32.totalorder %s16, 1
    %p66 = por %p64, %p65
    %p68 = scmp.ne.s32.totalorder %s51, %s67
    %p69 = scmp.eq.s32.totalorder %s16, 0
    %p70 = por %p68, %p69
    %s71 = sadd.s32 %s18, %s19
    %p72 = scmp.lt.s32.totalorder %s71, 0
    %s73 = scalar_select %p72, %s71, 0
    %s74 = sadd.s32 %s32, %s28
    %p75 = scmp.lt.s32.totalorder %s74, 0
    %s76 = scalar_select %p75, %s74, 0
    %s77 = ssub.s32 %s17, %s36
    %s78 = ssub.s32 %s73, %s76
    %s79 = sor.u32 %s77, %s78
    %p80 = scmp.eq.s32.totalorder %s79, 0
    %s82 = sadd.s32 %s81, 1
    %s83 = scalar_select %p80, %s81, %s82
    %p86 = pneg %p80
    %p87 = scmp.eq.s32.totalorder %s10, 1
    %p88 = por %p86, %p87
    %p89 = scmp.ne.s32.totalorder %s81, %s84
    %p90 = scmp.eq.s32.totalorder %s10, 0
    %p91 = por %p89, %p90
    %p92 = scmp.ne.s32.totalorder %s81, %s84
    %p93 = scmp.eq.s32.totalorder %s15, 1
    %p94 = por %p92, %p93
    %p95 = scmp.ne.s32.totalorder %s84, %s85
    %p96 = scmp.eq.s32.totalorder %s15, 0
    %p97 = por %p95, %p96
    %p98 = scmp.ne.s32.totalorder %s84, %s85
    %p99 = scmp.eq.s32.totalorder %s16, 1
    %p100 = por %p98, %p99
    %p102 = scmp.ne.s32.totalorder %s85, %s101
    %p103 = scmp.eq.s32.totalorder %s16, 0
    %p104 = por %p102, %p103
    %s105 = ssub.s32 %s17, %s36
    %s106 = ssub.s32 %s18, %s32
    %s107 = sor.u32 %s105, %s106
    %p108 = scmp.eq.s32.totalorder %s107, 0
    %s110 = sadd.s32 %s109, 1
    %s111 = scalar_select %p108, %s109, %s110
    %p114 = pneg %p108
    %p115 = scmp.eq.s32.totalorder %s10, 1
    %p116 = por %p114, %p115
    %p117 = scmp.ne.s32.totalorder %s109, %s112
    %p118 = scmp.eq.s32.totalorder %s10, 0
    %p119 = por %p117, %p118
    %p120 = scmp.ne.s32.totalorder %s109, %s112
    %p121 = scmp.eq.s32.totalorder %s15, 1
    %p122 = por %p120, %p121
    %p123 = scmp.ne.s32.totalorder %s112, %s113
    %p124 = scmp.eq.s32.totalorder %s15, 0
    %p125 = por %p123, %p124
    %p126 = scmp.ne.s32.totalorder %s112, %s113
    %p127 = scmp.eq.s32.totalorder %s16, 1
    %p128 = por %p126, %p127
    %p130 = scmp.ne.s32.totalorder %s113, %s129
    %p131 = scmp.eq.s32.totalorder %s16, 0
    %p132 = por %p130, %p131
    %s133 = ssub.s32 %s17, %s36
    %s134 = ssub.s32 %s18, %s32
    %s135 = sor.u32 %s133, %s134
    %p136 = scmp.eq.s32.totalorder %s135, 0
    %s138 = sadd.s32 %s137, 1
    %s139 = scalar_select %p136, %s137, %s138
    %p142 = pneg %p136
    %p143 = scmp.eq.s32.totalorder %s10, 1
    %p144 = por %p142, %p143
    %p145 = scmp.ne.s32.totalorder %s137, %s140
    %p146 = scmp.eq.s32.totalorder %s10, 0
    %p147 = por %p145, %p146
    %p148 = scmp.ne.s32.totalorder %s137, %s140
    %p149 = scmp.eq.s32.totalorder %s15, 1
    %p150 = por %p148, %p149
    %p151 = scmp.ne.s32.totalorder %s140, %s141
    %p152 = scmp.eq.s32.totalorder %s15, 0
    %p153 = por %p151, %p152
    %p154 = scmp.ne.s32.totalorder %s140, %s141
    %p155 = scmp.eq.s32.totalorder %s16, 1
    %p156 = por %p154, %p155
    %p158 = scmp.ne.s32.totalorder %s141, %s157
    %p159 = scmp.eq.s32.totalorder %s16, 0
    %p160 = por %p158, %p159
    %p161 = scmp.le.s32.totalorder 1, %s10
    %p162 = scmp.lt.s32.totalorder %s10, 3
    %p163 = pnand %p161, %p162
    %p164 = pneg %p163
    // Predicated region
    $region9: #{class_balanced_loss.1} parent=5 // pred_check
      _
    $region10: #{class_balanced_loss.1} parent=5 // pred_check_branch
      %166 = sbr.rel (%p163) target = $region12
    $region11: #{class_balanced_loss.1} parent=5 // pred_region
      %s167 = ssub.s32 %s10, 1
    $region12: #{class_balanced_loss.1} parent=5 // pred_fallthru
      _
    %p168 = scmp.lt.s32.totalorder %s10, 2
    // Predicated region
    $region13: #{class_balanced_loss.1} parent=5 // pred_check
      %p169 = pneg %p168
    $region14: #{class_balanced_loss.1} parent=5 // pred_check_branch
      %171 = sbr.rel (%p169) target = $region16
    $region15: #{class_balanced_loss.1} parent=5 // pred_region
      // Predicated region
      $region17: #{class_balanced_loss.1} parent=15 // pred_check
        %p172 = pneg %p57
      $region18: #{class_balanced_loss.1} parent=15 // pred_check_branch
        %174 = sbr.rel (%p172) target = $region20
      $region19: #{class_balanced_loss.1} parent=15 // pred_region
        %s175 = sadd.s32 %s18, %s19
        %p176 = scmp.lt.s32.totalorder %s175, 0
        %s177 = scalar_select %p176, %s175, 0
        %s178 = smul.u32 2, %s177
        %p179 = scmp.lt.s32.totalorder %s17, 1
        %s180 = scalar_select %p179, %s17, 1
        %p181 = scmp.lt.s32.totalorder %s178, 1
        %s182 = scalar_select %p181, %s178, 1
        %s183 = smul.addr %s180, 2
        %s184 = sadd.s32 %s182, %s183
        %s185 = scalar_lea.vmem %s0, %s184
        %s186 = sadd.s32 %s18, %s19
        %p187 = scmp.lt.s32.totalorder %s186, 0
        %s188 = scalar_select %p187, %s186, 0
        %s189 = smul.u32 2, %s188
      $region20: #{class_balanced_loss.1} parent=15 // pred_fallthru
        _
      // Predicated region
      $region21: #{class_balanced_loss.1} parent=15 // pred_check
        %p190 = pneg %p91
      $region22: #{class_balanced_loss.1} parent=15 // pred_check_branch
        %192 = sbr.rel (%p190) target = $region24
      $region23: #{class_balanced_loss.1} parent=15 // pred_region
        %s193 = sadd.s32 %s18, %s19
        %p194 = scmp.lt.s32.totalorder %s193, 0
        %s195 = scalar_select %p194, %s193, 0
        %s196 = smul.u32 2, %s195
        %p197 = scmp.lt.s32.totalorder %s17, 1
        %s198 = scalar_select %p197, %s17, 1
        %p199 = scmp.lt.s32.totalorder %s196, 1
        %s200 = scalar_select %p199, %s196, 1
        %s201 = smul.addr %s198, 2
        %s202 = sadd.s32 %s200, %s201
        %s203 = smul.addr %s202, 4
        %s204 = scalar_lea.vmem %s1, %s203
        %s205 = sadd.s32 %s18, %s19
        %p206 = scmp.lt.s32.totalorder %s205, 0
        %s207 = scalar_select %p206, %s205, 0
        %s208 = smul.u32 2, %s207
      $region24: #{class_balanced_loss.1} parent=15 // pred_fallthru
        _
    $region16: #{class_balanced_loss.1} parent=5 // pred_fallthru
      _
    %p209 = scmp.le.s32.totalorder 1, %s10
    %p210 = scmp.lt.s32.totalorder %s10, 3
    %p211 = pnand %p209, %p210
    %p212 = pneg %p211
    // Predicated region
    $region25: #{class_balanced_loss.1} parent=5 // pred_check
      _
    $region26: #{class_balanced_loss.1} parent=5 // pred_check_branch
      %214 = sbr.rel (%p211) target = $region28
    $region27: #{class_balanced_loss.1} parent=5 // pred_region
      %s215 = ssub.s32 %s10, 1
      %s216 = sadd.s32 %s21, %s22
      %p217 = scmp.lt.s32.totalorder %s216, 0
      %s218 = scalar_select %p217, %s216, 0
      %s219 = smul.u32 2, %s218
      %p220 = scmp.lt.s32.totalorder %s20, 1
      %s221 = scalar_select %p220, %s20, 1
      %p222 = scmp.lt.s32.totalorder %s219, 1
      %s223 = scalar_select %p222, %s219, 1
      %s224 = smul.addr %s221, 2
      %s225 = sadd.s32 %s223, %s224
      %s226 = scalar_lea.vmem %s0, %s225
      %p227 = pneg %p63
      %p228 = pneg %p60
      %s229 = sadd.s32 %s21, %s22
      %p230 = scmp.lt.s32.totalorder %s229, 0
      %s231 = scalar_select %p230, %s229, 0
      %s232 = smul.u32 2, %s231
      %p233 = scmp.lt.s32.totalorder %s20, 1
      %s234 = scalar_select %p233, %s20, 1
      %p235 = scmp.lt.s32.totalorder %s232, 1
      %s236 = scalar_select %p235, %s232, 1
      %s237 = smul.addr %s234, 2
      %s238 = sadd.s32 %s236, %s237
      %s239 = smul.addr %s238, 4
      %s240 = scalar_lea.vmem %s1, %s239
      %p241 = pneg %p97
      %p242 = pneg %p94
      %p243 = pneg %p125
      %p244 = pneg %p122
      %p245 = scmp.lt.s32.totalorder %s20, 1
      %s246 = scalar_select %p245, %s20, 1
      %p247 = scmp.lt.s32.totalorder %s21, 0
      %s248 = scalar_select %p247, %s21, 0
      %s249 = sadd.s32 %s248, %s246
      %s250 = smul.addr %s249, 4
      %s251 = scalar_lea.vmem %s2, %s250
      %p252 = pneg %p153
      %p253 = pneg %p150
      %p254 = scmp.lt.s32.totalorder %s20, 1
      %s255 = scalar_select %p254, %s20, 1
      %p256 = scmp.lt.s32.totalorder %s21, 0
      %s257 = scalar_select %p256, %s21, 0
      %s258 = sadd.s32 %s257, %s255
      %s259 = smul.addr %s258, 4
      %s260 = scalar_lea.vmem %s3, %s259
      %s261 = sadd.s32 %s21, %s22
      %p262 = scmp.lt.s32.totalorder %s261, 0
      %s263 = scalar_select %p262, %s261, 0
      %s264 = smul.u32 2, %s263
      %p265 = scmp.lt.s32.totalorder %s20, 1
      %s266 = scalar_select %p265, %s20, 1
      %p267 = scmp.lt.s32.totalorder %s264, 1
      %s268 = scalar_select %p267, %s264, 1
      %s269 = smul.addr %s266, 2
      %s270 = sadd.s32 %s268, %s269
      %s271 = scalar_lea.vmem %s0, %s270
      %s272 = sadd.s32 %s21, %s22
      %p273 = scmp.lt.s32.totalorder %s272, 0
      %s274 = scalar_select %p273, %s272, 0
      %s275 = smul.u32 2, %s274
      %s276 = sadd.s32 %s21, %s22
      %p277 = scmp.lt.s32.totalorder %s276, 0
      %s278 = scalar_select %p277, %s276, 0
      %s279 = smul.u32 2, %s278
      %p280 = scmp.lt.s32.totalorder %s20, 1
      %s281 = scalar_select %p280, %s20, 1
      %p282 = scmp.lt.s32.totalorder %s279, 1
      %s283 = scalar_select %p282, %s279, 1
      %s284 = smul.addr %s281, 2
      %s285 = sadd.s32 %s283, %s284
      %s286 = smul.addr %s285, 4
      %s287 = scalar_lea.vmem %s1, %s286
      %s288 = sadd.s32 %s21, %s22
      %p289 = scmp.lt.s32.totalorder %s288, 0
      %s290 = scalar_select %p289, %s288, 0
      %s291 = smul.u32 2, %s290
      %p292 = scmp.lt.s32.totalorder %s20, 1
      %s293 = scalar_select %p292, %s20, 1
      %p294 = scmp.lt.s32.totalorder %s21, 0
      %s295 = scalar_select %p294, %s21, 0
      %s296 = sadd.s32 %s295, %s293
      %s297 = smul.addr %s296, 4
      %s298 = scalar_lea.vmem %s2, %s297
      %p299 = scmp.lt.s32.totalorder %s20, 1
      %s300 = scalar_select %p299, %s20, 1
      %p301 = scmp.lt.s32.totalorder %s21, 0
      %s302 = scalar_select %p301, %s21, 0
      %s303 = sadd.s32 %s302, %s300
      %s304 = smul.addr %s303, 4
      %s305 = scalar_lea.vmem %s3, %s304
      %p306 = scmp.eq.s32.totalorder %s22, 0
      // Predicated region
      $region29: #{class_balanced_loss.1} parent=27 // pred_check
        %p307 = pneg %p306
      $region30: #{class_balanced_loss.1} parent=27 // pred_check_branch
        %309 = sbr.rel (%p307) target = $region32
      $region31: #{class_balanced_loss.1} parent=27 // pred_region
        %310 = vst [vmem:[#allocation2] sm:$0xff] 0.0
        %311 = vst [vmem:[#allocation3] sm:$0xff] 0.0
      $region32: #{class_balanced_loss.1} parent=27 // pred_fallthru
        _
      %v312 = vlaneseq
      %v313 = vshrl.u32 %v312, 7
      %v314 = vlaneseq
      %v315 = vand.u32 %v314, 127
      %v316 = vadd.s32 %v315, 128
      %s317 = sadd.s32 %s21, %s22
      %s318 = smul.u32 %s317, 256
      %v319 = vld [vmem:[#allocation2] sm:$0xff]
      %v320 = vld [vmem:[#allocation3] sm:$0xff]
      %v321 = vld [vmem:[%s287] sm:$0xff]
      %v322 = vld [vmem:[%s271] sm:$0x3]
      %v323 = vstv %s318
      %v324 = vadd.s32 %v323, %v315
      %v325 = vadd.s32 %v323, %v316
      %vm326 = vcmp.lt.s32.totalorder %v324, 256
      %vm327 = vcmp.lt.s32.totalorder %v325, 256
      %vm328 = vcmp.ge.s32.totalorder %v322, 0
      %vm329 = vcmp.lt.s32.totalorder %v322, 4
      %vm330 = vmand %vm328, %vm329
      %v331 = vsel %vm330, 1, 0
      %v332 = vperm.slane %v331, 0
      %v333 = vperm.slane %v331, 1
      %vm334 = vcmp.ne.s32.totalorder %v332, 0
      %vm335 = vcmp.ne.s32.totalorder %v333, 0
      %vm336 = vmand %vm326, %vm334
      %vm337 = vmand %vm327, %vm335
      %v338 = vperm.slane %v322, 0
      %v339 = vperm.slane %v322, 1
      %v340 = vsel %vm336, %v338, 4294967295
      %v341 = vsel %vm337, %v339, 4294967295
      %v342 = vperm.slane %v340, 0
      %v343 = vperm.slane %v341, 0
      %vm344 = vcmp.eq.s32.totalorder %v342, %v313
      %vm345 = vcmp.eq.s32.totalorder %v343, %v313
      %347 = vst [vmem:[#allocation1] ss:$2 sm:$0xff] %v321
      %v348 = vld.sshfl [vmem:[#allocation1] sm:$0xff pattern:$0x75316420]
      %v349 = vld.sshfl [vmem:[#allocation1 + $0x8] sm:$0xff pattern:$0x75316420]
      %vm352 = vcmask 1043456
      %v353 = vsel %vm352, %v348, -inf
      %v354 = vrot.slane %v353, 4
      %v355 = vmax.f32 %v353, %v354
      %v356 = vrot.slane %v355, 2
      %v357 = vmax.f32 %v355, %v356
      %v358 = vrot.slane %v357, 1
      %v359 = vmax.f32 %v357, %v358
      %v360 = vsel %vm352, %v349, -inf
      %v361 = vrot.slane %v360, 4
      %v362 = vmax.f32 %v360, %v361
      %v363 = vrot.slane %v362, 2
      %v364 = vmax.f32 %v362, %v363
      %v365 = vrot.slane %v364, 1
      %v366 = vmax.f32 %v364, %v365
      %v369 = vrot.slane %v366, 4
      %v370 = vsel %vm352, %v359, %v369
      %v372 = vsub.f32 %v321, %v370
      %v373 = vmul.f32 %v372, 1.442695
      %v374 = vpow.pop %v373
      %376 = vst [vmem:[#allocation1] ss:$2 sm:$0xff] %v374
      %v377 = vld.sshfl [vmem:[#allocation1] sm:$0xff pattern:$0x75316420]
      %v378 = vld.sshfl [vmem:[#allocation1 + $0x8] sm:$0xff pattern:$0x75316420]
      %v381 = vsel %vm352, %v377, 0.0
      %v382 = vrot.slane %v381, 4
      %v383 = vadd.f32 %v381, %v382
      %v384 = vrot.slane %v383, 2
      %v385 = vadd.f32 %v383, %v384
      %v386 = vrot.slane %v385, 1
      %v387 = vadd.f32 %v385, %v386
      %v388 = vsel %vm352, %v378, 0.0
      %v389 = vrot.slane %v388, 4
      %v390 = vadd.f32 %v388, %v389
      %v391 = vrot.slane %v390, 2
      %v392 = vadd.f32 %v390, %v391
      %v393 = vrot.slane %v392, 1
      %v394 = vadd.f32 %v392, %v393
      %v395 = vlog2.pop %v387
      %v396 = vmul.f32 %v395, 0.6931472
      %v397 = vlog2.pop %v394
      %v398 = vmul.f32 %v397, 0.6931472
      %v399 = vadd.f32 %v396, %v359
      %v400 = vadd.f32 %v398, %v366
      %v401 = vsel %vm344, 1, 0
      %v402 = vsel %vm345, 1, 0
      %v403 = vcvt.s32.f32 %v401
      %v404 = vcvt.s32.f32 %v402
      %v407 = vrot.slane %v404, 4
      %v408 = vsel %vm352, %v403, %v407
      %v410 = vadd.f32 %v319, %v408
      %411 = vst [vmem:[#allocation1] ss:$2 sm:$0xff] %v321
      %v412 = vld.sshfl [vmem:[#allocation1] sm:$0xff pattern:$0x75316420]
      %v413 = vld.sshfl [vmem:[#allocation1 + $0x8] sm:$0xff pattern:$0x75316420]
      %v416 = vsub.f32 %v399, %v412
      %v417 = vsub.f32 %v400, %v413
      %v418 = vsel %vm344, %v416, 0.0
      %v419 = vsel %vm345, %v417, 0.0
      %v422 = vrot.slane %v419, 4
      %v423 = vsel %vm352, %v418, %v422
      %v425 = vadd.f32 %v320, %v423
      %426 = vst [vmem:[#allocation2] sm:$0xff] %v410
      %427 = vst [vmem:[#allocation3] sm:$0xff] %v425
      // Predicated region
      $region33: #{class_balanced_loss.1} parent=27 // pred_check
        %p428 = pneg %p306
      $region34: #{class_balanced_loss.1} parent=27 // pred_check_branch
        %430 = sbr.rel (%p428) target = $region36
      $region35: #{class_balanced_loss.1} parent=27 // pred_region
        %v431 = vld [vmem:[#allocation2] sm:$0xff]
        %433 = vst [vmem:[#allocation1] ss:$2 sm:$0xff] %v431
        %v434 = vld.sshfl [vmem:[#allocation1] sm:$0xff pattern:$0x75316420]
        %v435 = vld.sshfl [vmem:[#allocation1 + $0x8] sm:$0xff pattern:$0x75316420]
        %v438 = vsel %vm352, %v434, 0.0
        %v439 = vsel %vm352, %v435, 0.0
        %v440 = vadd.f32 %v438, %v439
        %441 = vadd.xlane.f32.xlu0 %v440
        %v442 = vpop.xlane.xlu0 %441
        %vm443 = vcmask 3072
        %444 = vst.msk [vmem:[%s298] sm:$0xf] %vm443, %v442
        %v445 = vld [vmem:[#allocation3] sm:$0xff]
        %447 = vst [vmem:[#allocation1] ss:$2 sm:$0xff] %v445
        %v448 = vld.sshfl [vmem:[#allocation1] sm:$0xff pattern:$0x75316420]
        %v449 = vld.sshfl [vmem:[#allocation1 + $0x8] sm:$0xff pattern:$0x75316420]
        %v452 = vsel %vm352, %v448, 0.0
        %v453 = vsel %vm352, %v449, 0.0
        %v454 = vadd.f32 %v452, %v453
        %455 = vadd.xlane.f32.xlu0 %v454
        %v456 = vpop.xlane.xlu0 %455
        %457 = vst.msk [vmem:[%s305] sm:$0xf] %vm443, %v456
      $region36: #{class_balanced_loss.1} parent=27 // pred_fallthru
        _
      %p458 = scmp.lt.s32.totalorder %s20, 1
      %s459 = scalar_select %p458, %s20, 1
      %p460 = scmp.lt.s32.totalorder %s21, 0
      %s461 = scalar_select %p460, %s21, 0
      %s462 = sadd.s32 %s461, %s459
      %s463 = smul.addr %s462, 4
      %s464 = scalar_lea.vmem %s2, %s463
      %p465 = scmp.lt.s32.totalorder %s20, 1
      %s466 = scalar_select %p465, %s20, 1
      %p467 = scmp.lt.s32.totalorder %s21, 0
      %s468 = scalar_select %p467, %s21, 0
      %s469 = sadd.s32 %s468, %s466
      %s470 = smul.addr %s469, 4
      %s471 = scalar_lea.vmem %s3, %s470
      // Predicated region
      $region37: #{class_balanced_loss.1} parent=27 // pred_check
        %p472 = pneg %p122
      $region38: #{class_balanced_loss.1} parent=27 // pred_check_branch
        %474 = sbr.rel (%p472) target = $region40
      $region39: #{class_balanced_loss.1} parent=27 // pred_region
        _
      $region40: #{class_balanced_loss.1} parent=27 // pred_fallthru
        _
      // Predicated region
      $region41: #{class_balanced_loss.1} parent=27 // pred_check
        %p475 = pneg %p150
      $region42: #{class_balanced_loss.1} parent=27 // pred_check_branch
        %477 = sbr.rel (%p475) target = $region44
      $region43: #{class_balanced_loss.1} parent=27 // pred_region
        _
      $region44: #{class_balanced_loss.1} parent=27 // pred_fallthru
        _
    $region28: #{class_balanced_loss.1} parent=5 // pred_fallthru
      _
    %p478 = scmp.le.s32.totalorder 2, %s10
    // Predicated region
    $region45: #{class_balanced_loss.1} parent=5 // pred_check
      %p479 = pneg %p478
    $region46: #{class_balanced_loss.1} parent=5 // pred_check_branch
      %481 = sbr.rel (%p479) target = $region48
    $region47: #{class_balanced_loss.1} parent=5 // pred_region
      %s482 = ssub.s32 %s10, 2
      // Predicated region
      $region49: #{class_balanced_loss.1} parent=47 // pred_check
        %p483 = pneg %p128
      $region50: #{class_balanced_loss.1} parent=47 // pred_check_branch
        %485 = sbr.rel (%p483) target = $region52
      $region51: #{class_balanced_loss.1} parent=47 // pred_region
        %p486 = scmp.lt.s32.totalorder %s23, 1
        %s487 = scalar_select %p486, %s23, 1
        %p488 = scmp.lt.s32.totalorder %s24, 0
        %s489 = scalar_select %p488, %s24, 0
        %s490 = sadd.s32 %s489, %s487
        %s491 = smul.addr %s490, 4
        %s492 = scalar_lea.vmem %s2, %s491
      $region52: #{class_balanced_loss.1} parent=47 // pred_fallthru
        _
      // Predicated region
      $region53: #{class_balanced_loss.1} parent=47 // pred_check
        %p493 = pneg %p156
      $region54: #{class_balanced_loss.1} parent=47 // pred_check_branch
        %495 = sbr.rel (%p493) target = $region56
      $region55: #{class_balanced_loss.1} parent=47 // pred_region
        %p496 = scmp.lt.s32.totalorder %s23, 1
        %s497 = scalar_select %p496, %s23, 1
        %p498 = scmp.lt.s32.totalorder %s24, 0
        %s499 = scalar_select %p498, %s24, 0
        %s500 = sadd.s32 %s499, %s497
        %s501 = smul.addr %s500, 4
        %s502 = scalar_lea.vmem %s3, %s501
      $region56: #{class_balanced_loss.1} parent=47 // pred_fallthru
        _
    $region48: #{class_balanced_loss.1} parent=5 // pred_fallthru
      _
  $region6: #{class_balanced_loss.1} parent=0 // loop_footer
    %s14 = sadd.s32 1, %s10
  $region7: #{class_balanced_loss.1} parent=0 // loop_footer_branch
    %9 = sbr.rel target = $region3
  $region8: #{class_balanced_loss.1} parent=0 // loop_exit
    _

</llo_original>
